<compile_context>
chip_gen: v7x
topology: tpu7x:2x2x1
jax: 0.10.0
libtpu: 0.0.40
codegen_flags: <defaults>
</compile_context>

<pallas_src>
import functools

import jax
import jax.numpy as jnp
from jax import lax
from jax.experimental import pallas as pl
from jax.experimental.pallas import tpu as pltpu


def _head_kernel(x_ref, wq_ref, wk_ref, wv_ref, bias_ref, o_ref):
    """One grid step == `bb` batch elements.

    x_ref    : (bb, T, C)  VMEM, bf16
    wq_ref   : (C, H)      VMEM, bf16  (scale C**-0.5 already folded in)
    wk_ref   : (C, H)      VMEM, bf16
    wv_ref   : (C, H)      VMEM, bf16
    bias_ref : (T, T)      VMEM, f32   (0 on/below diagonal, -1e30 above)
    o_ref    : (bb, T, H)  VMEM, out dtype
    """
    bb, T, C = x_ref.shape
    H = o_ref.shape[-1]

    # ---- q/k/v projections: bf16 MXU matmuls, f32 accumulation ----
    x2d = x_ref[...].reshape(bb * T, C)                               # bf16
    q = jnp.dot(x2d, wq_ref[...], preferred_element_type=jnp.float32)
    k = jnp.dot(x2d, wk_ref[...], preferred_element_type=jnp.float32)
    v = jnp.dot(x2d, wv_ref[...], preferred_element_type=jnp.float32)
    q = q.reshape(bb, T, H).astype(jnp.bfloat16)
    k = k.reshape(bb, T, H).astype(jnp.bfloat16)
    v = v.reshape(bb, T, H).astype(jnp.bfloat16)

    # ---- scores: batched q @ k^T (no explicit transpose), causal bias add ----
    # scale is already folded into wq; mask is a resident additive bias.
    s = jnp.einsum('bqh,bkh->bqk', q, k,
                   preferred_element_type=jnp.float32)                # (bb,T,T) f32
    s = s + bias_ref[...][None, :, :]

    # ---- numerically-stable softmax numerator in f32 ----
    m = jnp.max(s, axis=-1, keepdims=True)
    e = jnp.exp(s - m)                                                # f32
    denom = jnp.sum(e, axis=-1, keepdims=True)                        # (bb,T,1) f32

    # ---- PV matmul on the un-normalized numerator; normalize the output ----
    o = jnp.einsum('bqk,bkh->bqh', e.astype(jnp.bfloat16), v,
                   preferred_element_type=jnp.float32)                # (bb,T,H) f32
    # approx reciprocal runs on the EUP; use approx=False if accuracy regresses.
    o = o * pl.reciprocal(denom, approx=True)
    o_ref[...] = o.astype(o_ref.dtype)


def prepare_head_params(wk, wq, wv):
    """Hoisted per-parameter-update prep: transpose, fold scale into Wq, bf16.

    wk/wq/wv are in PyTorch nn.Linear layout: (head_size, n_embed).
    """
    H, C = wq.shape
    scale = float(C) ** -0.5                   # matches reference: C, not head_size
    wq_t = (wq.astype(jnp.float32) * scale).T.astype(jnp.bfloat16)    # (C, H)
    wk_t = wk.astype(jnp.float32).T.astype(jnp.bfloat16)              # (C, H)
    wv_t = wv.astype(jnp.float32).T.astype(jnp.bfloat16)              # (C, H)
    return wq_t, wk_t, wv_t


@functools.lru_cache(maxsize=None)
def _causal_bias(T):
    """(T,T) additive causal bias: 0 on/below diagonal, -1e30 above."""
    row = lax.broadcasted_iota(jnp.int32, (T, 1), 0)
    col = lax.broadcasted_iota(jnp.int32, (1, T), 1)
    return jnp.where(col <= row, 0.0, -1e30).astype(jnp.float32)


def _vmem_estimate_bytes(bb, T, C, H):
    """Rough per-step VMEM footprint (I/O blocks + softmax temporaries)."""
    io = 2 * 2 * bb * T * C * 2          # x block, double-buffered, bf16
    io += T * T * 4 + 3 * C * H * 2      # bias + weights (resident)
    io += 2 * bb * T * H * 4             # output block, double-buffered
    temps = 4 * bb * T * T * 4           # s, e (+ slack) f32 compiler temporaries
    return io + temps


def head_forward(x, params, *, max_block_b=16, vmem_budget=20 * 1024 * 1024):
    """x: (B, T, C) f32; params: output of prepare_head_params."""
    wq_t, wk_t, wv_t = params
    B, T, C = x.shape
    H = wq_t.shape[1]

    # Block several batch elements per grid step to amortize the ~0.35us
    # per-step overhead, but keep >= 2 grid steps when B >= 2 so the grid's
    # "parallel" axis can shard across both v7x TensorCores.
    bb = min(max_block_b, max(1, B // 2))
    # Keep compiler-managed (bb,T,T) softmax temporaries within a VMEM budget
    # (v7x has 64 MiB physical VMEM, half of v5e/v6e).
    while bb > 1 and _vmem_estimate_bytes(bb, T, C, H) > vmem_budget:
        bb -= 1
    while B % bb:                          # fall back to a divisor of B
        bb -= 1
    if T % 8:
        bb = 1                             # keeps (bb,T,C)->(bb*T,C) reshape layout-free

    x_bf = x.astype(jnp.bfloat16)
    bias = _causal_bias(T)

    return pl.pallas_call(
        _head_kernel,
        out_shape=jax.ShapeDtypeStruct((B, T, H), x.dtype),
        grid_spec=pltpu.PrefetchScalarGridSpec(
            num_scalar_prefetch=0,
            grid=(B // bb,),
            in_specs=[
                pl.BlockSpec((bb, T, C), lambda b: (b, 0, 0)),   # x block
                pl.BlockSpec((C, H), lambda b: (0, 0)),          # Wq (scaled), resident
                pl.BlockSpec((C, H), lambda b: (0, 0)),          # Wk, resident
                pl.BlockSpec((C, H), lambda b: (0, 0)),          # Wv, resident
                pl.BlockSpec((T, T), lambda b: (0, 0)),          # causal bias, resident
            ],
            out_specs=pl.BlockSpec((bb, T, H), lambda b: (b, 0, 0)),
        ),
        compiler_params=pltpu.CompilerParams(
            dimension_semantics=("parallel",),
            vmem_limit_bytes=32 * 1024 * 1024,
        ),
    )(x_bf, wq_t, wk_t, wv_t, bias)


def head_reference(x, wk, wq, wv):
    """Pure-JAX f32 reference mirroring the PyTorch forward (eval mode)."""
    B, T, C = x.shape
    k = x @ wk.T
    q = x @ wq.T
    v = x @ wv.T
    w = (q @ jnp.swapaxes(k, -2, -1)) * (C ** -0.5)
    tril = jnp.tril(jnp.ones((T, T), dtype=bool))
    w = jnp.where(tril, w, -jnp.inf)
    w = jax.nn.softmax(w, axis=-1)
    return w @ v


if __name__ == "__main__":
    key = jax.random.PRNGKey(0)

    def run_case(B, T, C, H, key):
        kx, kk, kq, kv = jax.random.split(key, 4)
        x = jax.random.normal(kx, (B, T, C), dtype=jnp.float32)
        wk = jax.random.normal(kk, (H, C), dtype=jnp.float32) * 0.1
        wq = jax.random.normal(kq, (H, C), dtype=jnp.float32) * 0.1
        wv = jax.random.normal(kv, (H, C), dtype=jnp.float32) * 0.1

        params = prepare_head_params(wk, wq, wv)   # hoisted weight prep
        out = jax.block_until_ready(head_forward(x, params))
        ref = head_reference(x, wk, wq, wv)
        assert out.shape == (B, T, H)
        # bf16 MXU operands + approx EUP reciprocal vs. f32 reference
        assert jnp.allclose(out, ref, atol=2e-2, rtol=2e-2), \
            f"mismatch vs reference for shape B={B} T={T} C={C} H={H}"

    # shapes consistent with the module: n_embed=32, head_size=16, T<=BLOCK_SIZE
    run_case(B=2, T=8, C=32, H=16, key=jax.random.fold_in(key, 0))
    run_case(B=4, T=64, C=32, H=16, key=jax.random.fold_in(key, 1))

    print("KERNEL_OK")
</pallas_src>

<mosaic_0001>
module attributes {stable_mosaic.version = 11 : i64} {
  func.func @_head_kernel(%arg0: i32, %arg1: memref<1x8x32xbf16, #tpu.memory_space<vmem>>, %arg2: memref<32x16xbf16, #tpu.memory_space<vmem>>, %arg3: memref<32x16xbf16, #tpu.memory_space<vmem>>, %arg4: memref<32x16xbf16, #tpu.memory_space<vmem>>, %arg5: memref<8x8xf32, #tpu.memory_space<vmem>>, %arg6: memref<1x8x16xf32, #tpu.memory_space<vmem>>) attributes {dimension_semantics = [#tpu.dimension_semantics<parallel>], iteration_bounds = array<i64: 2>, scalar_prefetch = 0 : i64, scratch_operands = 0 : i64, tpu.core_type = #tpu.core_type<tc>, window_params = [{transform_indices = @transform_0, window_bounds = array<i64: 1, 8, 32>}, {pipeline_mode = #tpu.pipeline_mode<synchronous>, transform_indices = @transform_1, window_bounds = array<i64: 32, 16>}, {pipeline_mode = #tpu.pipeline_mode<synchronous>, transform_indices = @transform_2, window_bounds = array<i64: 32, 16>}, {pipeline_mode = #tpu.pipeline_mode<synchronous>, transform_indices = @transform_3, window_bounds = array<i64: 32, 16>}, {pipeline_mode = #tpu.pipeline_mode<synchronous>, transform_indices = @transform_4, window_bounds = array<i64: 8, 8>}, {transform_indices = @transform_5, window_bounds = array<i64: 1, 8, 16>}]} {
    %c0 = arith.constant 0 : index
    %c0_0 = arith.constant 0 : index
    %c0_1 = arith.constant 0 : index
    %0 = vector.load %arg1[%c0, %c0_0, %c0_1] : memref<1x8x32xbf16, #tpu.memory_space<vmem>>, vector<1x8x32xbf16>
    %1 = vector.shape_cast %0 : vector<1x8x32xbf16> to vector<8x32xbf16>
    %c0_2 = arith.constant 0 : index
    %c0_3 = arith.constant 0 : index
    %2 = vector.load %arg2[%c0_2, %c0_3] : memref<32x16xbf16, #tpu.memory_space<vmem>>, vector<32x16xbf16>
    %cst = arith.constant dense<0.000000e+00> : vector<8x16xf32>
    %3 = tpu.matmul %1, %2, %cst {dimension_numbers = #tpu.dot_dimension_numbers<[1], [0], [0], [1], [0, 0, 1, 1], [], []>} : vector<8x32xbf16>, vector<32x16xbf16>, vector<8x16xf32> -> vector<8x16xf32>
    %c0_4 = arith.constant 0 : index
    %c0_5 = arith.constant 0 : index
    %4 = vector.load %arg3[%c0_4, %c0_5] : memref<32x16xbf16, #tpu.memory_space<vmem>>, vector<32x16xbf16>
    %cst_6 = arith.constant dense<0.000000e+00> : vector<8x16xf32>
    %5 = tpu.matmul %1, %4, %cst_6 {dimension_numbers = #tpu.dot_dimension_numbers<[1], [0], [0], [1], [0, 0, 1, 1], [], []>} : vector<8x32xbf16>, vector<32x16xbf16>, vector<8x16xf32> -> vector<8x16xf32>
    %c0_7 = arith.constant 0 : index
    %c0_8 = arith.constant 0 : index
    %6 = vector.load %arg4[%c0_7, %c0_8] : memref<32x16xbf16, #tpu.memory_space<vmem>>, vector<32x16xbf16>
    %cst_9 = arith.constant dense<0.000000e+00> : vector<8x16xf32>
    %7 = tpu.matmul %1, %6, %cst_9 {dimension_numbers = #tpu.dot_dimension_numbers<[1], [0], [0], [1], [0, 0, 1, 1], [], []>} : vector<8x32xbf16>, vector<32x16xbf16>, vector<8x16xf32> -> vector<8x16xf32>
    %8 = vector.shape_cast %3 : vector<8x16xf32> to vector<1x8x16xf32>
    %9 = arith.truncf %8 : vector<1x8x16xf32> to vector<1x8x16xbf16>
    %10 = vector.shape_cast %5 : vector<8x16xf32> to vector<1x8x16xf32>
    %11 = arith.truncf %10 : vector<1x8x16xf32> to vector<1x8x16xbf16>
    %12 = vector.shape_cast %7 : vector<8x16xf32> to vector<1x8x16xf32>
    %13 = arith.truncf %12 : vector<1x8x16xf32> to vector<1x8x16xbf16>
    "tpu.trace_start"() <{level = 10 : i32, message = "bqh,bkh->bqk"}> : () -> ()
    %cst_10 = arith.constant dense<0.000000e+00> : vector<1x8x8xf32>
    %14 = tpu.matmul %9, %11, %cst_10 {dimension_numbers = #tpu.dot_dimension_numbers<[2], [2], [1], [1], [0, 0, 0, 1, 1, 1], [0], [0]>} : vector<1x8x16xbf16>, vector<1x8x16xbf16>, vector<1x8x8xf32> -> vector<1x8x8xf32>
    "tpu.trace_stop"() : () -> ()
    %c0_11 = arith.constant 0 : index
    %c0_12 = arith.constant 0 : index
    %15 = vector.load %arg5[%c0_11, %c0_12] : memref<8x8xf32, #tpu.memory_space<vmem>>, vector<8x8xf32>
    %16 = vector.shape_cast %15 : vector<8x8xf32> to vector<1x8x8xf32>
    %17 = arith.addf %14, %16 : vector<1x8x8xf32>
    %cst_13 = arith.constant dense<0xFF800000> : vector<1x8xf32>
    %18 = vector.multi_reduction <maximumf>, %17, %cst_13 [2] : vector<1x8x8xf32> to vector<1x8xf32>
    %19 = vector.shape_cast %18 : vector<1x8xf32> to vector<1x8x1xf32>
    %20 = vector.broadcast %19 : vector<1x8x1xf32> to vector<1x8x8xf32>
    %21 = arith.subf %17, %20 : vector<1x8x8xf32>
    %22 = math.exp %21 : vector<1x8x8xf32>
    %cst_14 = arith.constant dense<0.000000e+00> : vector<1x8xf32>
    %23 = vector.multi_reduction <add>, %22, %cst_14 [2] : vector<1x8x8xf32> to vector<1x8xf32>
    %24 = vector.shape_cast %23 : vector<1x8xf32> to vector<1x8x1xf32>
    %25 = arith.truncf %22 : vector<1x8x8xf32> to vector<1x8x8xbf16>
    "tpu.trace_start"() <{level = 10 : i32, message = "bqk,bkh->bqh"}> : () -> ()
    %cst_15 = arith.constant dense<0.000000e+00> : vector<1x8x16xf32>
    %26 = tpu.matmul %25, %13, %cst_15 {dimension_numbers = #tpu.dot_dimension_numbers<[2], [1], [1], [2], [0, 0, 0, 1, 1, 2], [0], [0]>} : vector<1x8x8xbf16>, vector<1x8x16xbf16>, vector<1x8x16xf32> -> vector<1x8x16xf32>
    "tpu.trace_stop"() : () -> ()
    %27 = tpu.reciprocal %24 {approx = true} : vector<1x8x1xf32> -> vector<1x8x1xf32>
    %28 = vector.broadcast %27 : vector<1x8x1xf32> to vector<1x8x16xf32>
    %29 = arith.mulf %26, %28 : vector<1x8x16xf32>
    %c0_16 = arith.constant 0 : index
    %c0_17 = arith.constant 0 : index
    %c0_18 = arith.constant 0 : index
    %30 = vector.load %arg6[%c0_16, %c0_17, %c0_18] : memref<1x8x16xf32, #tpu.memory_space<vmem>>, vector<1x8x16xf32>
    tpu.vector_store %arg6[%c0_16, %c0_17, %c0_18], %29 {strides = array<i32>} : memref<1x8x16xf32, #tpu.memory_space<vmem>>, vector<1x8x16xf32>,
    return
  }
  func.func @transform_0(%arg0: i32) -> (i32, i32, i32) {
    %c0_i32 = arith.constant 0 : i32
    %c0_i32_0 = arith.constant 0 : i32
    %c0_i32_1 = arith.constant 0 : i32
    return %arg0, %c0_i32, %c0_i32_0 : i32, i32, i32
  }
  func.func @transform_1(%arg0: i32) -> (i32, i32) {
    %c0_i32 = arith.constant 0 : i32
    %c0_i32_0 = arith.constant 0 : i32
    %c0_i32_1 = arith.constant 0 : i32
    return %c0_i32, %c0_i32_0 : i32, i32
  }
  func.func @transform_2(%arg0: i32) -> (i32, i32) {
    %c0_i32 = arith.constant 0 : i32
    %c0_i32_0 = arith.constant 0 : i32
    %c0_i32_1 = arith.constant 0 : i32
    return %c0_i32, %c0_i32_0 : i32, i32
  }
  func.func @transform_3(%arg0: i32) -> (i32, i32) {
    %c0_i32 = arith.constant 0 : i32
    %c0_i32_0 = arith.constant 0 : i32
    %c0_i32_1 = arith.constant 0 : i32
    return %c0_i32, %c0_i32_0 : i32, i32
  }
  func.func @transform_4(%arg0: i32) -> (i32, i32) {
    %c0_i32 = arith.constant 0 : i32
    %c0_i32_0 = arith.constant 0 : i32
    %c0_i32_1 = arith.constant 0 : i32
    return %c0_i32, %c0_i32_0 : i32, i32
  }
  func.func @transform_5(%arg0: i32) -> (i32, i32, i32) {
    %c0_i32 = arith.constant 0 : i32
    %c0_i32_0 = arith.constant 0 : i32
    %c0_i32_1 = arith.constant 0 : i32
    return %arg0, %c0_i32, %c0_i32_0 : i32, i32, i32
  }
}

</mosaic_0001>

<llo_original>
// kernel: tpu_custom_call.1
$region0: #{tpu_custom_call.1}
  #allocation0 [shape = 'u32[]', space=smem, size = 0x4, offset = 0x4, fixed_abs, tag = 'smem constant byte address 0x4 - core index']
  #allocation1 [shape = 'u32[144,128]{1,0:T(1,128)}', space=vmem, size = 0x12000, scoped, tag = 'internal scratch']
  %s0 = inlined_call_operand.vmem [shape: bf16[2,8,32], index: 0, kind: input, shape index: {}]
  %s1 = inlined_call_operand.vmem [shape: bf16[32,16], index: 1, kind: input, shape index: {}]
  %s2 = inlined_call_operand.vmem [shape: bf16[32,16], index: 2, kind: input, shape index: {}]
  %s3 = inlined_call_operand.vmem [shape: bf16[32,16], index: 3, kind: input, shape index: {}]
  %s4 = inlined_call_operand.vmem [shape: f32[8,8], index: 4, kind: input, shape index: {}]
  %s5 = inlined_call_operand.hbm [shape: f32[2,8,16], index: 5, kind: output, shape index: {}]
  %s6 = sld [smem:[#allocation0]]
  $region53: #{tpu_custom_call.1} parent=0
    _
  %s8 = ssub.s32 1, %s6
  %s9 = scalar_select 0, %s8, %s6
  $region1: #{tpu_custom_call.1} parent=0
    #allocation2 [shape = 'u8[8192]{0}', space=vmem, size = 0x2000, scoped, tag = 'output window, operand 0']
    #allocation3 [shape = 's32[2]{0}', space=sflag, size = 0x8, scoped, tag = 'scoped memory for tpu_custom_call.1']
    %10 = vsyncpa [#allocation3], 0
    %s11 = scalar_lea.sflag [#allocation3], 1
    %12 = vsyncpa %s11, 0
    loop: start=0, step=1, limit=4
    $region2: #{tpu_custom_call.1} parent=1 // loop_pre_header
      _
    $region3: #{tpu_custom_call.1} parent=1 // loop_header
      %s14 = sphi 0, %s18
      %p15 = scmp.ge.s32.totalorder %s14, 4
      %s24 = sphi 0, %s26
      %s27 = sphi 0, %s24
      %s28 = sphi 0, %s27
      %s44 = sphi 0, %s28
      %s48 = sphi 0, %s48
      %s50 = sphi 0, %s48
      %s51 = sphi 0, %s50
      %s65 = sphi 0, %s51
      %s69 = sphi 0, %s69
      %s71 = sphi 0, %s69
      %s72 = sphi 0, %s71
      %s86 = sphi 0, %s72
      %s90 = sphi 0, %s90
      %s92 = sphi 0, %s90
      %s93 = sphi 0, %s92
      %s107 = sphi 0, %s93
      %s111 = sphi 0, %s111
      %s113 = sphi 0, %s111
      %s114 = sphi 0, %s113
      %s128 = sphi 0, %s114
      %s134 = sphi 0, %s136
      %s137 = sphi 0, %s134
      %s138 = sphi 0, %s137
      %s154 = sphi 0, %s138
    $region4: #{tpu_custom_call.1} parent=1 // loop_header_branch
      %17 = sbr.rel (%p15) target = $region8
    $region5: #{tpu_custom_call.1} parent=1 // loop_body
      %s19 = ssub.s32 %s14, 1
      %s20 = ssub.s32 %s14, 2
      %s21 = sadd.s32 %s14, 1
      %s22 = ssub.s32 %s14, %s21
      %p23 = scmp.eq.s32.totalorder %s22, 0
      %s25 = sadd.s32 %s24, 1
      %s26 = scalar_select %p23, %s24, %s25
      %p29 = pneg %p23
      %p30 = scmp.eq.s32.totalorder %s14, 1
      %p31 = por %p29, %p30
      %p32 = scmp.ne.s32.totalorder %s24, %s27
      %p33 = scmp.eq.s32.totalorder %s14, 0
      %p34 = por %p32, %p33
      %p35 = scmp.ne.s32.totalorder %s24, %s27
      %p36 = scmp.eq.s32.totalorder %s19, 1
      %p37 = por %p35, %p36
      %p38 = scmp.ne.s32.totalorder %s27, %s28
      %p39 = scmp.eq.s32.totalorder %s19, 0
      %p40 = por %p38, %p39
      %p41 = scmp.ne.s32.totalorder %s27, %s28
      %p42 = scmp.eq.s32.totalorder %s20, 1
      %p43 = por %p41, %p42
      %p45 = scmp.ne.s32.totalorder %s28, %s44
      %p46 = scmp.eq.s32.totalorder %s20, 0
      %p47 = por %p45, %p46
      %s49 = sadd.s32 %s48, 1
      %p52 = scmp.eq.s32.totalorder %s14, 1
      %p53 = scmp.ne.s32.totalorder %s48, %s50
      %p54 = scmp.eq.s32.totalorder %s14, 0
      %p55 = por %p53, %p54
      %p56 = scmp.ne.s32.totalorder %s48, %s50
      %p57 = scmp.eq.s32.totalorder %s19, 1
      %p58 = por %p56, %p57
      %p59 = scmp.ne.s32.totalorder %s50, %s51
      %p60 = scmp.eq.s32.totalorder %s19, 0
      %p61 = por %p59, %p60
      %p62 = scmp.ne.s32.totalorder %s50, %s51
      %p63 = scmp.eq.s32.totalorder %s20, 1
      %p64 = por %p62, %p63
      %p66 = scmp.ne.s32.totalorder %s51, %s65
      %p67 = scmp.eq.s32.totalorder %s20, 0
      %p68 = por %p66, %p67
      %s70 = sadd.s32 %s69, 1
      %p73 = scmp.eq.s32.totalorder %s14, 1
      %p74 = scmp.ne.s32.totalorder %s69, %s71
      %p75 = scmp.eq.s32.totalorder %s14, 0
      %p76 = por %p74, %p75
      %p77 = scmp.ne.s32.totalorder %s69, %s71
      %p78 = scmp.eq.s32.totalorder %s19, 1
      %p79 = por %p77, %p78
      %p80 = scmp.ne.s32.totalorder %s71, %s72
      %p81 = scmp.eq.s32.totalorder %s19, 0
      %p82 = por %p80, %p81
      %p83 = scmp.ne.s32.totalorder %s71, %s72
      %p84 = scmp.eq.s32.totalorder %s20, 1
      %p85 = por %p83, %p84
      %p87 = scmp.ne.s32.totalorder %s72, %s86
      %p88 = scmp.eq.s32.totalorder %s20, 0
      %p89 = por %p87, %p88
      %s91 = sadd.s32 %s90, 1
      %p94 = scmp.eq.s32.totalorder %s14, 1
      %p95 = scmp.ne.s32.totalorder %s90, %s92
      %p96 = scmp.eq.s32.totalorder %s14, 0
      %p97 = por %p95, %p96
      %p98 = scmp.ne.s32.totalorder %s90, %s92
      %p99 = scmp.eq.s32.totalorder %s19, 1
      %p100 = por %p98, %p99
      %p101 = scmp.ne.s32.totalorder %s92, %s93
      %p102 = scmp.eq.s32.totalorder %s19, 0
      %p103 = por %p101, %p102
      %p104 = scmp.ne.s32.totalorder %s92, %s93
      %p105 = scmp.eq.s32.totalorder %s20, 1
      %p106 = por %p104, %p105
      %p108 = scmp.ne.s32.totalorder %s93, %s107
      %p109 = scmp.eq.s32.totalorder %s20, 0
      %p110 = por %p108, %p109
      %s112 = sadd.s32 %s111, 1
      %p115 = scmp.eq.s32.totalorder %s14, 1
      %p116 = scmp.ne.s32.totalorder %s111, %s113
      %p117 = scmp.eq.s32.totalorder %s14, 0
      %p118 = por %p116, %p117
      %p119 = scmp.ne.s32.totalorder %s111, %s113
      %p120 = scmp.eq.s32.totalorder %s19, 1
      %p121 = por %p119, %p120
      %p122 = scmp.ne.s32.totalorder %s113, %s114
      %p123 = scmp.eq.s32.totalorder %s19, 0
      %p124 = por %p122, %p123
      %p125 = scmp.ne.s32.totalorder %s113, %s114
      %p126 = scmp.eq.s32.totalorder %s20, 1
      %p127 = por %p125, %p126
      %p129 = scmp.ne.s32.totalorder %s114, %s128
      %p130 = scmp.eq.s32.totalorder %s20, 0
      %p131 = por %p129, %p130
      %s132 = ssub.s32 %s14, %s21
      %p133 = scmp.eq.s32.totalorder %s132, 0
      %s135 = sadd.s32 %s134, 1
      %s136 = scalar_select %p133, %s134, %s135
      %p139 = pneg %p133
      %p140 = scmp.eq.s32.totalorder %s14, 1
      %p141 = por %p139, %p140
      %p142 = scmp.ne.s32.totalorder %s134, %s137
      %p143 = scmp.eq.s32.totalorder %s14, 0
      %p144 = por %p142, %p143
      %p145 = scmp.ne.s32.totalorder %s134, %s137
      %p146 = scmp.eq.s32.totalorder %s19, 1
      %p147 = por %p145, %p146
      %p148 = scmp.ne.s32.totalorder %s137, %s138
      %p149 = scmp.eq.s32.totalorder %s19, 0
      %p150 = por %p148, %p149
      %p151 = scmp.ne.s32.totalorder %s137, %s138
      %p152 = scmp.eq.s32.totalorder %s20, 1
      %p153 = por %p151, %p152
      %p155 = scmp.ne.s32.totalorder %s138, %s154
      %p156 = scmp.eq.s32.totalorder %s20, 0
      %p157 = por %p155, %p156
      %p158 = scmp.le.s32.totalorder 1, %s14
      %p159 = scmp.lt.s32.totalorder %s14, 3
      %p160 = pnand %p158, %p159
      %p161 = pneg %p160
      // Predicated region
      $region9: #{tpu_custom_call.1} parent=5 // pred_check
        _
      $region10: #{tpu_custom_call.1} parent=5 // pred_check_branch
        %163 = sbr.rel (%p160) target = $region12
      $region11: #{tpu_custom_call.1} parent=5 // pred_region
        %s164 = ssub.s32 %s14, 1
        // Predicated region
        $region13: #{tpu_custom_call.1} parent=11 // pred_check
          %p165 = pneg %p61
        $region14: #{tpu_custom_call.1} parent=11 // pred_check_branch
          %167 = sbr.rel (%p165) target = $region16
        $region15: #{tpu_custom_call.1} parent=11 // pred_region
          _
        $region16: #{tpu_custom_call.1} parent=11 // pred_fallthru
          _
        // Predicated region
        $region17: #{tpu_custom_call.1} parent=11 // pred_check
          %p168 = pneg %p82
        $region18: #{tpu_custom_call.1} parent=11 // pred_check_branch
          %170 = sbr.rel (%p168) target = $region20
        $region19: #{tpu_custom_call.1} parent=11 // pred_region
          _
        $region20: #{tpu_custom_call.1} parent=11 // pred_fallthru
          _
        // Predicated region
        $region21: #{tpu_custom_call.1} parent=11 // pred_check
          %p171 = pneg %p103
        $region22: #{tpu_custom_call.1} parent=11 // pred_check_branch
          %173 = sbr.rel (%p171) target = $region24
        $region23: #{tpu_custom_call.1} parent=11 // pred_region
          _
        $region24: #{tpu_custom_call.1} parent=11 // pred_fallthru
          _
        // Predicated region
        $region25: #{tpu_custom_call.1} parent=11 // pred_check
          %p174 = pneg %p124
        $region26: #{tpu_custom_call.1} parent=11 // pred_check_branch
          %176 = sbr.rel (%p174) target = $region28
        $region27: #{tpu_custom_call.1} parent=11 // pred_region
          _
        $region28: #{tpu_custom_call.1} parent=11 // pred_fallthru
          _
      $region12: #{tpu_custom_call.1} parent=5 // pred_fallthru
        _
      %p177 = scmp.lt.s32.totalorder %s14, 2
      // Predicated region
      $region29: #{tpu_custom_call.1} parent=5 // pred_check
        %p178 = pneg %p177
      $region30: #{tpu_custom_call.1} parent=5 // pred_check_branch
        %180 = sbr.rel (%p178) target = $region32
      $region31: #{tpu_custom_call.1} parent=5 // pred_region
        // Predicated region
        $region33: #{tpu_custom_call.1} parent=31 // pred_check
          %p181 = pneg %p34
        $region34: #{tpu_custom_call.1} parent=31 // pred_check_branch
          %183 = sbr.rel (%p181) target = $region36
        $region35: #{tpu_custom_call.1} parent=31 // pred_region
          %p184 = scmp.lt.s32.totalorder %s14, 1
          %s185 = scalar_select %p184, %s14, 1
          %s186 = smul.addr %s185, 4
          %s187 = scalar_lea.vmem %s0, %s186
        $region36: #{tpu_custom_call.1} parent=31 // pred_fallthru
          _
      $region32: #{tpu_custom_call.1} parent=5 // pred_fallthru
        _
      %p188 = scmp.le.s32.totalorder 1, %s14
      %p189 = scmp.lt.s32.totalorder %s14, 3
      %p190 = pnand %p188, %p189
      %p191 = pneg %p190
      // Predicated region
      $region37: #{tpu_custom_call.1} parent=5 // pred_check
        _
      $region38: #{tpu_custom_call.1} parent=5 // pred_check_branch
        %193 = sbr.rel (%p190) target = $region40
      $region39: #{tpu_custom_call.1} parent=5 // pred_region
        %s194 = ssub.s32 %s14, 1
        %p195 = scmp.lt.s32.totalorder %s19, 1
        %s196 = scalar_select %p195, %s19, 1
        %s197 = smul.addr %s196, 4
        %s198 = scalar_lea.vmem %s0, %s197
        %p199 = pneg %p40
        %p200 = pneg %p37
        %p201 = pneg %p61
        %p202 = pneg %p58
        %p203 = pneg %p82
        %p204 = pneg %p79
        %p205 = pneg %p103
        %p206 = pneg %p100
        %p207 = pneg %p124
        %p208 = pneg %p121
        %p209 = pneg %p150
        %p210 = pneg %p147
        %s211 = sand.u32 %s137, 1
        %s212 = scalar_lea.sflag [#allocation3], %s211
        %s213 = sand.u32 %s137, 1
        %s214 = smul.addr %s213, 8
        %s215 = scalar_lea.vmem [#allocation2], %s214
        %p216 = scmp.lt.s32.totalorder %s19, 1
        %s217 = scalar_select %p216, %s19, 1
        %s218 = smul.addr %s217, 4
        %s219 = scalar_lea.vmem %s0, %s218
        %v221 = vld [vmem:[%s219] sm:$0xf]
        %v222 = vld [vmem:[%s1] sm:$0xf]
        %v223 = vld [vmem:[%s1 + $0x4] sm:$0xf]
        %v224 = vld [vmem:[%s1 + $0x8] sm:$0xf]
        %v225 = vld [vmem:[%s1 + $0xc] sm:$0xf]
        %v230 = vunpack.c.l.b16 %v222
        %v231 = vunpack.c.l.b16 %v223
        %v232 = vunpack.c.l.b16 %v224
        %v233 = vunpack.c.l.b16 %v225
        %v234 = vpack.c.b16 %v231, %v230
        %v235 = vpack.c.b16 %v233, %v232
        %vm238 = vcmask 261120
        %v240 = vsel %vm238, %v221, 0
        %242 = vmatprep.subr.bf16.mxu0 0
        %243 = vmatpush1.bf16.msra.mxu0 %v234
        %244 = vmatprep.subr.bf16.mxu0 0
        %245 = vmatpush1.bf16.msra.mxu0 %v235
        %246 = vmatprep.subr.bf16.mxu0 0
        %247 = vmatpush1.bf16.msra.mxu0 0
        %248 = vmatprep.subr.bf16.mxu0 0
        %249 = vmatpush1.bf16.msra.mxu0 0
        %250 = vmatprep.subr.bf16.mxu0 0
        %251 = vmatpush1.bf16.msra.mxu0 0
        %252 = vmatprep.subr.bf16.mxu0 0
        %253 = vmatpush1.bf16.msra.mxu0 0
        %254 = vmatprep.subr.bf16.mxu0 0
        %255 = vmatpush1.bf16.msra.mxu0 0
        %256 = vmatprep.subr.bf16.mxu0 0
        %257 = vmatpush1.bf16.msra.mxu0 0
        %258 = vmatprep.subr.bf16.mxu0 0
        %259 = vmatpush1.bf16.msra.mxu0 0
        %260 = vmatprep.subr.bf16.mxu0 0
        %261 = vmatpush1.bf16.msra.mxu0 0
        %262 = vmatprep.subr.bf16.mxu0 0
        %263 = vmatpush1.bf16.msra.mxu0 0
        %264 = vmatprep.subr.bf16.mxu0 0
        %265 = vmatpush1.bf16.msra.mxu0 0
        %266 = vmatprep.subr.bf16.mxu0 0
        %267 = vmatpush1.bf16.msra.mxu0 0
        %268 = vmatprep.subr.bf16.mxu0 0
        %269 = vmatpush1.bf16.msra.mxu0 0
        %270 = vmatprep.subr.bf16.mxu0 0
        %271 = vmatpush1.bf16.msra.mxu0 0
        %272 = vmatprep.subr.bf16.mxu0 0
        %273 = vmatpush1.bf16.msra.mxu0 0
        %274 = vmatprep.mubr.bf16.mxu0 0
        %275 = vmatmul.mubr.bf16.gmra.mrb[0].mxu0 %v240
        %v276 = vpop.f32.mrb[0].mxu0
        %v277 = vadd.f32 0.0, %v276
        %v278 = vpop.f32.mrb[0].mxu0
        %v279 = vpop.f32.mrb[0].mxu0
        %v280 = vpop.f32.mrb[0].mxu0
        %281 = vdwg.mxu0
        %v282 = vld [vmem:[%s2] sm:$0xf]
        %v283 = vld [vmem:[%s2 + $0x4] sm:$0xf]
        %v284 = vld [vmem:[%s2 + $0x8] sm:$0xf]
        %v285 = vld [vmem:[%s2 + $0xc] sm:$0xf]
        %v290 = vunpack.c.l.b16 %v282
        %v291 = vunpack.c.l.b16 %v283
        %v292 = vunpack.c.l.b16 %v284
        %v293 = vunpack.c.l.b16 %v285
        %v294 = vpack.c.b16 %v291, %v290
        %v295 = vpack.c.b16 %v293, %v292
        %298 = vmatprep.subr.bf16.mxu0 0
        %299 = vmatpush1.bf16.msra.mxu0 %v294
        %300 = vmatprep.subr.bf16.mxu0 0
        %301 = vmatpush1.bf16.msra.mxu0 %v295
        %302 = vmatprep.subr.bf16.mxu0 0
        %303 = vmatpush1.bf16.msra.mxu0 0
        %304 = vmatprep.subr.bf16.mxu0 0
        %305 = vmatpush1.bf16.msra.mxu0 0
        %306 = vmatprep.subr.bf16.mxu0 0
        %307 = vmatpush1.bf16.msra.mxu0 0
        %308 = vmatprep.subr.bf16.mxu0 0
        %309 = vmatpush1.bf16.msra.mxu0 0
        %310 = vmatprep.subr.bf16.mxu0 0
        %311 = vmatpush1.bf16.msra.mxu0 0
        %312 = vmatprep.subr.bf16.mxu0 0
        %313 = vmatpush1.bf16.msra.mxu0 0
        %314 = vmatprep.subr.bf16.mxu0 0
        %315 = vmatpush1.bf16.msra.mxu0 0
        %316 = vmatprep.subr.bf16.mxu0 0
        %317 = vmatpush1.bf16.msra.mxu0 0
        %318 = vmatprep.subr.bf16.mxu0 0
        %319 = vmatpush1.bf16.msra.mxu0 0
        %320 = vmatprep.subr.bf16.mxu0 0
        %321 = vmatpush1.bf16.msra.mxu0 0
        %322 = vmatprep.subr.bf16.mxu0 0
        %323 = vmatpush1.bf16.msra.mxu0 0
        %324 = vmatprep.subr.bf16.mxu0 0
        %325 = vmatpush1.bf16.msra.mxu0 0
        %326 = vmatprep.subr.bf16.mxu0 0
        %327 = vmatpush1.bf16.msra.mxu0 0
        %328 = vmatprep.subr.bf16.mxu0 0
        %329 = vmatpush1.bf16.msra.mxu0 0
        %330 = vmatprep.mubr.bf16.mxu0 0
        %331 = vmatmul.mubr.bf16.gmra.mrb[0].mxu0 %v240
        %v332 = vpop.f32.mrb[0].mxu0
        %v333 = vadd.f32 0.0, %v332
        %v334 = vpop.f32.mrb[0].mxu0
        %v335 = vpop.f32.mrb[0].mxu0
        %v336 = vpop.f32.mrb[0].mxu0
        %337 = vdwg.mxu0
        %v338 = vld [vmem:[%s3] sm:$0xf]
        %v339 = vld [vmem:[%s3 + $0x4] sm:$0xf]
        %v340 = vld [vmem:[%s3 + $0x8] sm:$0xf]
        %v341 = vld [vmem:[%s3 + $0xc] sm:$0xf]
        %v346 = vunpack.c.l.b16 %v338
        %v347 = vunpack.c.l.b16 %v339
        %v348 = vunpack.c.l.b16 %v340
        %v349 = vunpack.c.l.b16 %v341
        %v350 = vpack.c.b16 %v347, %v346
        %v351 = vpack.c.b16 %v349, %v348
        %354 = vmatprep.subr.bf16.mxu0 0
        %355 = vmatpush1.bf16.msra.mxu0 %v350
        %356 = vmatprep.subr.bf16.mxu0 0
        %357 = vmatpush1.bf16.msra.mxu0 %v351
        %358 = vmatprep.subr.bf16.mxu0 0
        %359 = vmatpush1.bf16.msra.mxu0 0
        %360 = vmatprep.subr.bf16.mxu0 0
        %361 = vmatpush1.bf16.msra.mxu0 0
        %362 = vmatprep.subr.bf16.mxu0 0
        %363 = vmatpush1.bf16.msra.mxu0 0
        %364 = vmatprep.subr.bf16.mxu0 0
        %365 = vmatpush1.bf16.msra.mxu0 0
        %366 = vmatprep.subr.bf16.mxu0 0
        %367 = vmatpush1.bf16.msra.mxu0 0
        %368 = vmatprep.subr.bf16.mxu0 0
        %369 = vmatpush1.bf16.msra.mxu0 0
        %370 = vmatprep.subr.bf16.mxu0 0
        %371 = vmatpush1.bf16.msra.mxu0 0
        %372 = vmatprep.subr.bf16.mxu0 0
        %373 = vmatpush1.bf16.msra.mxu0 0
        %374 = vmatprep.subr.bf16.mxu0 0
        %375 = vmatpush1.bf16.msra.mxu0 0
        %376 = vmatprep.subr.bf16.mxu0 0
        %377 = vmatpush1.bf16.msra.mxu0 0
        %378 = vmatprep.subr.bf16.mxu0 0
        %379 = vmatpush1.bf16.msra.mxu0 0
        %380 = vmatprep.subr.bf16.mxu0 0
        %381 = vmatpush1.bf16.msra.mxu0 0
        %382 = vmatprep.subr.bf16.mxu0 0
        %383 = vmatpush1.bf16.msra.mxu0 0
        %384 = vmatprep.subr.bf16.mxu0 0
        %385 = vmatpush1.bf16.msra.mxu0 0
        %386 = vmatprep.mubr.bf16.mxu0 0
        %387 = vmatmul.mubr.bf16.gmra.mrb[0].mxu0 %v240
        %v388 = vpop.f32.mrb[0].mxu0
        %v389 = vadd.f32 0.0, %v388
        %v390 = vpop.f32.mrb[0].mxu0
        %v391 = vpop.f32.mrb[0].mxu0
        %v392 = vpop.f32.mrb[0].mxu0
        %393 = vdwg.mxu0
        %v394 = vpack.c.bf16 %v277, %v277
        %v395 = vpack.c.bf16 %v333, %v333
        %v396 = vpack.c.bf16 %v389, %v389
        %v397 = vld [vmem:[%s4] sm:$0xff]
        %vm398 = vcmask 130048
        %v400 = vsel %vm398, %v394, 0
        %v403 = vsel %vm398, %v395, 0
        %405 = vmatprep.subr.bf16.mxu0 0
        %406 = vmatpush1.bf16.xpose.msra.mxu0 %v403
        %407 = vmatprep.subr.bf16.mxu0 0
        %408 = vmatpush1.bf16.xpose.msra.mxu0 0
        %409 = vmatprep.subr.bf16.mxu0 0
        %410 = vmatpush1.bf16.xpose.msra.mxu0 0
        %411 = vmatprep.subr.bf16.mxu0 0
        %412 = vmatpush1.bf16.xpose.msra.mxu0 0
        %413 = vmatprep.subr.bf16.mxu0 0
        %414 = vmatpush1.bf16.xpose.msra.mxu0 0
        %415 = vmatprep.subr.bf16.mxu0 0
        %416 = vmatpush1.bf16.xpose.msra.mxu0 0
        %417 = vmatprep.subr.bf16.mxu0 0
        %418 = vmatpush1.bf16.xpose.msra.mxu0 0
        %419 = vmatprep.subr.bf16.mxu0 0
        %420 = vmatpush1.bf16.xpose.msra.mxu0 0
        %421 = vmatprep.subr.bf16.mxu0 0
        %422 = vmatpush1.bf16.xpose.msra.mxu0 0
        %423 = vmatprep.subr.bf16.mxu0 0
        %424 = vmatpush1.bf16.xpose.msra.mxu0 0
        %425 = vmatprep.subr.bf16.mxu0 0
        %426 = vmatpush1.bf16.xpose.msra.mxu0 0
        %427 = vmatprep.subr.bf16.mxu0 0
        %428 = vmatpush1.bf16.xpose.msra.mxu0 0
        %429 = vmatprep.subr.bf16.mxu0 0
        %430 = vmatpush1.bf16.xpose.msra.mxu0 0
        %431 = vmatprep.subr.bf16.mxu0 0
        %432 = vmatpush1.bf16.xpose.msra.mxu0 0
        %433 = vmatprep.subr.bf16.mxu0 0
        %434 = vmatpush1.bf16.xpose.msra.mxu0 0
        %435 = vmatprep.subr.bf16.mxu0 0
        %436 = vmatpush1.bf16.xpose.msra.mxu0 0
        %437 = vmatprep.mubr.bf16.mxu0 0
        %438 = vmatmul.mubr.bf16.gmra.mrb[0].mxu0 %v400
        %v439 = vpop.f32.mrb[0].mxu0
        %v440 = vadd.f32 %v397, %v439
        %v441 = vpop.f32.mrb[0].mxu0
        %v442 = vpop.f32.mrb[0].mxu0
        %v443 = vpop.f32.mrb[0].mxu0
        %444 = vdwg.mxu0
        %vm445 = vcmask 64512
        %v446 = vsel %vm445, %v440, -inf
        %447 = vmax.xlane.f32.xlu0 %v446
        %v448 = vpop.xlane.xlu0 %447
        %v449 = vsub.f32 %v440, %v448
        %v450 = vmul.f32 %v449, 1.442695
        %v451 = vpow.pop %v450
        %v452 = vsel %vm445, %v451, 0.0
        %453 = vadd.xlane.f32.xlu0 %v452
        %v454 = vpop.xlane.xlu0 %453
        %v455 = vpack.c.bf16 %v451, %v451
        %v457 = vsel %vm445, %v455, 0
        %vm459 = vcmask 1043456
        %v461 = vsel %vm459, %v396, 0
        %463 = vmatprep.subr.bf16.mxu0 0
        %464 = vmatpush1.bf16.msra.mxu0 %v461
        %465 = vmatprep.subr.bf16.mxu0 0
        %466 = vmatpush1.bf16.msra.mxu0 0
        %467 = vmatprep.subr.bf16.mxu0 0
        %468 = vmatpush1.bf16.msra.mxu0 0
        %469 = vmatprep.subr.bf16.mxu0 0
        %470 = vmatpush1.bf16.msra.mxu0 0
        %471 = vmatprep.subr.bf16.mxu0 0
        %472 = vmatpush1.bf16.msra.mxu0 0
        %473 = vmatprep.subr.bf16.mxu0 0
        %474 = vmatpush1.bf16.msra.mxu0 0
        %475 = vmatprep.subr.bf16.mxu0 0
        %476 = vmatpush1.bf16.msra.mxu0 0
        %477 = vmatprep.subr.bf16.mxu0 0
        %478 = vmatpush1.bf16.msra.mxu0 0
        %479 = vmatprep.subr.bf16.mxu0 0
        %480 = vmatpush1.bf16.msra.mxu0 0
        %481 = vmatprep.subr.bf16.mxu0 0
        %482 = vmatpush1.bf16.msra.mxu0 0
        %483 = vmatprep.subr.bf16.mxu0 0
        %484 = vmatpush1.bf16.msra.mxu0 0
        %485 = vmatprep.subr.bf16.mxu0 0
        %486 = vmatpush1.bf16.msra.mxu0 0
        %487 = vmatprep.subr.bf16.mxu0 0
        %488 = vmatpush1.bf16.msra.mxu0 0
        %489 = vmatprep.subr.bf16.mxu0 0
        %490 = vmatpush1.bf16.msra.mxu0 0
        %491 = vmatprep.subr.bf16.mxu0 0
        %492 = vmatpush1.bf16.msra.mxu0 0
        %493 = vmatprep.subr.bf16.mxu0 0
        %494 = vmatpush1.bf16.msra.mxu0 0
        %495 = vmatprep.mubr.bf16.mxu0 0
        %496 = vmatmul.mubr.bf16.gmra.mrb[0].mxu0 %v457
        %v497 = vpop.f32.mrb[0].mxu0
        %v498 = vadd.f32 0.0, %v497
        %v499 = vpop.f32.mrb[0].mxu0
        %v500 = vpop.f32.mrb[0].mxu0
        %v501 = vpop.f32.mrb[0].mxu0
        %502 = vdwg.mxu0
        %v503 = vrcp.pop %v454
        %v504 = vmul.f32 %v498, %v503
        %505 = vst.msk [vmem:[%s215] sm:$0xff] %vm398, %v504
        %s506 = sand.u32 %s137, 1
        %s507 = scalar_lea.sflag [#allocation3], %s506
        %s508 = sand.u32 %s137, 1
        %s509 = smul.addr %s508, 8
        %s510 = scalar_lea.vmem [#allocation2], %s509
        // Predicated region
        $region41: #{tpu_custom_call.1} parent=39 // pred_check
          %p511 = pneg %p147
        $region42: #{tpu_custom_call.1} parent=39 // pred_check_branch
          %513 = sbr.rel (%p511) target = $region44
        $region43: #{tpu_custom_call.1} parent=39 // pred_region
          %s515 = ssub.s32 128, 128
          %516 = vsyncadd %s507, %s515
          %s517 = smul.addr %s19, 128
          %s518 = scalar_lea.hbm %s5, %s517
          %s520 = sshll.u32 %s510, 4
          %s521 = int_to_ptr.vmem [resolvable:$true] %s520
          %523 = dma.vmem_to_hbm [thread:$0]  %s521, 128, %s518, %s507
        $region44: #{tpu_custom_call.1} parent=39 // pred_fallthru
          _
      $region40: #{tpu_custom_call.1} parent=5 // pred_fallthru
        _
      %p524 = scmp.le.s32.totalorder 2, %s14
      // Predicated region
      $region45: #{tpu_custom_call.1} parent=5 // pred_check
        %p525 = pneg %p524
      $region46: #{tpu_custom_call.1} parent=5 // pred_check_branch
        %527 = sbr.rel (%p525) target = $region48
      $region47: #{tpu_custom_call.1} parent=5 // pred_region
        %s528 = ssub.s32 %s14, 2
        // Predicated region
        $region49: #{tpu_custom_call.1} parent=47 // pred_check
          %p529 = pneg %p153
        $region50: #{tpu_custom_call.1} parent=47 // pred_check_branch
          %531 = sbr.rel (%p529) target = $region52
        $region51: #{tpu_custom_call.1} parent=47 // pred_region
          %s532 = sand.u32 %s138, 1
          %s533 = scalar_lea.sflag [#allocation3], %s532
          %s534 = sand.u32 %s138, 1
          %s535 = smul.addr %s534, 8
          %s536 = scalar_lea.vmem [#allocation2], %s535
          %537 = dma.done %s533, 128
        $region52: #{tpu_custom_call.1} parent=47 // pred_fallthru
          _
      $region48: #{tpu_custom_call.1} parent=5 // pred_fallthru
        _
    $region6: #{tpu_custom_call.1} parent=1 // loop_footer
      %s18 = sadd.s32 1, %s14
    $region7: #{tpu_custom_call.1} parent=1 // loop_footer_branch
      %13 = sbr.rel target = $region3
    $region8: #{tpu_custom_call.1} parent=1 // loop_exit
      _
    %538 = vsyncpa [#allocation3], 1
    %s539 = scalar_lea.sflag [#allocation3], 1
    %540 = vsyncpa %s539, 1

</llo_original>
